<compile_context>
chip_gen: v7x
topology: tpu7x:2x2x1
jax: 0.10.0
libtpu: 0.0.40
codegen_flags: <defaults>
</compile_context>

<pallas_src>
import jax
import jax.numpy as jnp
from jax.experimental import pallas as pl
from jax.experimental.pallas import tpu as pltpu


def _interval_to_real_kernel(x_ref, scale_ref, shift_ref, o_ref):
    x = x_ref[...].astype(jnp.float32)          # compute in f32 even for bf16 I/O
    u = x * scale_ref[...] + shift_ref[...]     # affine: [xmin, xmax] -> [-1, 1]
    denom = 1.0 - jnp.abs(u)                    # inverse softclip, bound = 1 (denom > 0 inside the interval)
    o_ref[...] = (u / denom).astype(o_ref.dtype)


def _round_up(n: int, m: int) -> int:
    return ((n + m - 1) // m) * m


def _block_byte_budget() -> int:
    """Per-block byte budget by TPU generation (footprint = 4x this, double-buffered in+out)."""
    try:
        kind = jax.devices()[0].device_kind.lower()
    except Exception:
        kind = ""
    if "v7" in kind:
        return 4 << 20   # v7x: ~3.2 TB/s HBM; 4 MiB blocks keep per-step overhead ~5%; 16 MiB < 32 MiB scoped
    return 2 << 20       # v5e / v6e: 8 MiB double-buffered total, safely under the 16 MiB scoped default


def interval_to_real(x: jax.Array, xmin: jax.Array, xmax: jax.Array,
                     *, block_byte_budget: int | None = None) -> jax.Array:
    """z = InverseSoftclip(bound=1)(Affine(scale, shift)(x)), elementwise over (B, D).

    x:           (B, D) float32 or bfloat16, values strictly inside (xmin, xmax)
    xmin, xmax:  (D,)   per-feature interval bounds
    """
    B, D = x.shape
    dtype = x.dtype
    itemsize = jnp.dtype(dtype).itemsize

    # Hoisted per-feature affine parameters (computed once, O(D), negligible HBM traffic). Always f32.
    xmin_f = xmin.astype(jnp.float32).reshape(1, D)
    xmax_f = xmax.astype(jnp.float32).reshape(1, D)
    scale = 2.0 / (xmax_f - xmin_f)
    shift = 1.0 - scale * xmax_f

    budget = _block_byte_budget() if block_byte_budget is None else int(block_byte_budget)

    # --- tile selection (physical, lane-padded footprint accounting; no array padding needed) ---
    lane_D = _round_up(D, 128)
    if lane_D * 8 * itemsize <= budget:
        # Typical flow case: feature dim fits one block -> use the FULL extent D (no 128 padding,
        # no pad/slice in the wrapper). Alternative for tiny D + huge B: fold rows into lanes.
        tc = D
    else:
        # Very wide feature dim: lane-dense tiles, boundary column block handled by masked stores.
        tc = max(128, (budget // (8 * itemsize) // 128) * 128)
    lane_tc = _round_up(tc, 128)
    tr = max(8, (budget // (lane_tc * itemsize) // 8) * 8)
    tr = min(tr, _round_up(B, 8))

    # Columns OUTER so the (1, tc) scale/shift block index is constant across the inner row loop
    # (Pallas skips the redundant param DMAs). Both axes are elementwise-independent -> "parallel".
    grid = (pl.cdiv(D, tc), pl.cdiv(B, tr))

    # Explicit scoped-VMEM limit: 2x(in+out) blocks + 2x(scale+shift) blocks, plus slack.
    blk_bytes = _round_up(tr, 8) * lane_tc * itemsize
    par_bytes = 8 * lane_tc * 4
    vmem_limit = int(min(64 << 20, max(4 * blk_bytes + 4 * par_bytes + (8 << 20), 16 << 20)))

    return pl.pallas_call(
        _interval_to_real_kernel,
        out_shape=jax.ShapeDtypeStruct((B, D), dtype),
        grid_spec=pltpu.PrefetchScalarGridSpec(
            num_scalar_prefetch=0,
            grid=grid,
            in_specs=[
                pl.BlockSpec((tr, tc), lambda j, i: (i, j)),
                pl.BlockSpec((1, tc), lambda j, i: (0, j)),   # loop-invariant across inner axis
                pl.BlockSpec((1, tc), lambda j, i: (0, j)),
            ],
            out_specs=pl.BlockSpec((tr, tc), lambda j, i: (i, j)),
        ),
        compiler_params=pltpu.CompilerParams(
            dimension_semantics=("parallel", "parallel"),
            vmem_limit_bytes=vmem_limit),
    )(x, scale, shift)


def interval_to_real_ref(x, xmin, xmax):
    x = x.astype(jnp.float32)
    scale = 2.0 / (xmax - xmin)
    shift = 1.0 - scale * xmax
    u = x * scale[None, :] + shift[None, :]
    return u / (1.0 - jnp.abs(u))


def _make_inputs(key, B, D, dtype=jnp.float32):
    k1, k2, k3 = jax.random.split(key, 3)
    xmin = -1.0 - jax.random.uniform(k1, (D,), jnp.float32)          # in [-2, -1)
    xmax = 1.0 + jax.random.uniform(k2, (D,), jnp.float32)           # in [1, 2)
    frac = 0.05 + 0.9 * jax.random.uniform(k3, (B, D), jnp.float32)  # strictly inside
    x = (xmin[None, :] + (xmax - xmin)[None, :] * frac).astype(dtype)
    return x, xmin, xmax


def _check(x, xmin, xmax, rtol, atol, **kw):
    z = jax.block_until_ready(interval_to_real(x, xmin, xmax, **kw))
    z_ref = interval_to_real_ref(x, xmin, xmax)
    assert z.shape == x.shape and z.dtype == x.dtype
    assert jnp.allclose(z.astype(jnp.float32), z_ref, rtol=rtol, atol=atol), "mismatch vs reference"


if __name__ == "__main__":
    key = jax.random.PRNGKey(0)

    # 1) Aligned case.
    x, lo, hi = _make_inputs(key, 16, 128)
    _check(x, lo, hi, rtol=1e-5, atol=1e-5)

    # 2) Ragged case (B not multiple of 8, D not multiple of 128) -> no pad, no slice, masked boundary.
    x, lo, hi = _make_inputs(jax.random.PRNGKey(1), 10, 96)
    _check(x, lo, hi, rtol=1e-5, atol=1e-5)

    # 3) Tiny flow-like feature dim: full-extent (narrow-lane) blocks, no 128 padding.
    x, lo, hi = _make_inputs(jax.random.PRNGKey(2), 8, 6)
    _check(x, lo, hi, rtol=1e-5, atol=1e-5)

    # 4) Forced multi-column-block path (small budget override) with a ragged boundary column block.
    x, lo, hi = _make_inputs(jax.random.PRNGKey(3), 64, 640)
    _check(x, lo, hi, rtol=1e-5, atol=1e-5, block_byte_budget=8192)

    # 5) bf16 storage / f32 compute path.
    x, lo, hi = _make_inputs(jax.random.PRNGKey(4), 32, 64, dtype=jnp.bfloat16)
    _check(x, lo, hi, rtol=1e-2, atol=5e-2)

    print("KERNEL_OK")
</pallas_src>

<mosaic_0001>
module attributes {stable_mosaic.version = 11 : i64} {
  func.func @_interval_to_real_kernel(%arg0: i32, %arg1: i32, %arg2: memref<16x128xf32, #tpu.memory_space<vmem>>, %arg3: memref<1x128xf32, #tpu.memory_space<vmem>>, %arg4: memref<1x128xf32, #tpu.memory_space<vmem>>, %arg5: memref<16x128xf32, #tpu.memory_space<vmem>>) attributes {dimension_semantics = [#tpu.dimension_semantics<parallel>, #tpu.dimension_semantics<parallel>], iteration_bounds = array<i64: 1, 1>, scalar_prefetch = 0 : i64, scratch_operands = 0 : i64, tpu.core_type = #tpu.core_type<tc>, window_params = [{transform_indices = @transform_0, window_bounds = array<i64: 16, 128>}, {transform_indices = @transform_1, window_bounds = array<i64: 1, 128>}, {transform_indices = @transform_2, window_bounds = array<i64: 1, 128>}, {transform_indices = @transform_3, window_bounds = array<i64: 16, 128>}]} {
    %c0 = arith.constant 0 : index
    %c0_0 = arith.constant 0 : index
    %0 = vector.load %arg2[%c0, %c0_0] : memref<16x128xf32, #tpu.memory_space<vmem>>, vector<16x128xf32>
    %c0_1 = arith.constant 0 : index
    %c0_2 = arith.constant 0 : index
    %1 = vector.load %arg3[%c0_1, %c0_2] : memref<1x128xf32, #tpu.memory_space<vmem>>, vector<1x128xf32>
    %2 = vector.broadcast %1 : vector<1x128xf32> to vector<16x128xf32>
    %3 = arith.mulf %0, %2 : vector<16x128xf32>
    %c0_3 = arith.constant 0 : index
    %c0_4 = arith.constant 0 : index
    %4 = vector.load %arg4[%c0_3, %c0_4] : memref<1x128xf32, #tpu.memory_space<vmem>>, vector<1x128xf32>
    %5 = vector.broadcast %4 : vector<1x128xf32> to vector<16x128xf32>
    %6 = arith.addf %3, %5 : vector<16x128xf32>
    %7 = math.absf %6 : vector<16x128xf32>
    %cst = arith.constant 1.000000e+00 : f32
    %8 = vector.broadcast %cst : f32 to vector<16x128xf32>
    %9 = arith.subf %8, %7 : vector<16x128xf32>
    %10 = arith.divf %6, %9 : vector<16x128xf32>
    %c0_5 = arith.constant 0 : index
    %c0_6 = arith.constant 0 : index
    %11 = vector.load %arg5[%c0_5, %c0_6] : memref<16x128xf32, #tpu.memory_space<vmem>>, vector<16x128xf32>
    tpu.vector_store %arg5[%c0_5, %c0_6], %10 {strides = array<i32>} : memref<16x128xf32, #tpu.memory_space<vmem>>, vector<16x128xf32>,
    return
  }
  func.func @transform_0(%arg0: i32, %arg1: i32) -> (i32, i32) {
    %c0_i32 = arith.constant 0 : i32
    return %arg1, %arg0 : i32, i32
  }
  func.func @transform_1(%arg0: i32, %arg1: i32) -> (i32, i32) {
    %c0_i32 = arith.constant 0 : i32
    %c0_i32_0 = arith.constant 0 : i32
    return %c0_i32, %arg0 : i32, i32
  }
  func.func @transform_2(%arg0: i32, %arg1: i32) -> (i32, i32) {
    %c0_i32 = arith.constant 0 : i32
    %c0_i32_0 = arith.constant 0 : i32
    return %c0_i32, %arg0 : i32, i32
  }
  func.func @transform_3(%arg0: i32, %arg1: i32) -> (i32, i32) {
    %c0_i32 = arith.constant 0 : i32
    return %arg1, %arg0 : i32, i32
  }
}

</mosaic_0001>

<llo_original>
// kernel: tpu_custom_call.1
$region0: #{tpu_custom_call.1}
  #allocation0 [shape = 'u32[]', space=smem, size = 0x4, offset = 0x4, fixed_abs, tag = 'smem constant byte address 0x4 - core index']
  #allocation1 [shape = 'u32[144,128]{1,0:T(1,128)}', space=vmem, size = 0x12000, scoped, tag = 'internal scratch']
  %s0 = inlined_call_operand.hbm [shape: f32[16,128], index: 0, kind: input, shape index: {}]
  %s1 = inlined_call_operand.vmem [shape: f32[1,128], index: 1, kind: input, shape index: {}]
  %s2 = inlined_call_operand.vmem [shape: f32[1,128], index: 2, kind: input, shape index: {}]
  %s3 = inlined_call_operand.hbm [shape: f32[16,128], index: 3, kind: output, shape index: {}]
  %s4 = sld [smem:[#allocation0]]
  $region26: #{tpu_custom_call.1} parent=0
    _
  %s6 = ssub.s32 1, %s4
  %s7 = scalar_select 0, %s6, %s4
  $region1: #{tpu_custom_call.1} parent=0
    #allocation2 [shape = 'u8[8192]{0}', space=vmem, size = 0x2000, scoped, tag = 'input window, operand 0, single buffered']
    #allocation3 [shape = 's32[1]{0}', space=sflag, size = 0x4, scoped, tag = 'scoped memory for tpu_custom_call.1']
    #allocation4 [shape = 's32[1]{0}', space=sflag, size = 0x4, scoped, tag = 'scoped memory for tpu_custom_call.1']
    #allocation5 [shape = 'u8[8192]{0}', space=vmem, size = 0x2000, scoped, tag = 'output window, operand 0, single buffered']
    %8 = vsyncpa [#allocation3], 0
    %9 = vsyncpa [#allocation4], 0
    // Predicated region
    $region2: #{tpu_custom_call.1} parent=1 // pred_check
      _
    $region3: #{tpu_custom_call.1} parent=1 // pred_check_branch
      %11 = sbr.rel (0) target = $region5
    $region4: #{tpu_custom_call.1} parent=1 // pred_region
      %s13 = ssub.s32 256, 256
      %14 = vsyncadd [#allocation3], %s13
      %s15 = sshll.u32 [#allocation2], 4
      %s16 = int_to_ptr.vmem [resolvable:$true] %s15
      %21 = dma.hbm_to_vmem [thread:$0]  %s0, 256, %s16, [#allocation3], 128, 128, 8
    $region5: #{tpu_custom_call.1} parent=1 // pred_fallthru
      _
    // Predicated region
    $region6: #{tpu_custom_call.1} parent=1 // pred_check
      _
    $region7: #{tpu_custom_call.1} parent=1 // pred_check_branch
      %23 = sbr.rel (0) target = $region9
    $region8: #{tpu_custom_call.1} parent=1 // pred_region
      _
    $region9: #{tpu_custom_call.1} parent=1 // pred_fallthru
      _
    // Predicated region
    $region10: #{tpu_custom_call.1} parent=1 // pred_check
      _
    $region11: #{tpu_custom_call.1} parent=1 // pred_check_branch
      %25 = sbr.rel (0) target = $region13
    $region12: #{tpu_custom_call.1} parent=1 // pred_region
      _
    $region13: #{tpu_custom_call.1} parent=1 // pred_fallthru
      _
    // Predicated region
    $region14: #{tpu_custom_call.1} parent=1 // pred_check
      _
    $region15: #{tpu_custom_call.1} parent=1 // pred_check_branch
      %27 = sbr.rel (0) target = $region17
    $region16: #{tpu_custom_call.1} parent=1 // pred_region
      %28 = dma.done [#allocation3], 256
    $region17: #{tpu_custom_call.1} parent=1 // pred_fallthru
      _
    %v29 = vld [vmem:[#allocation2] sm:$0xff]
    %v30 = vld [vmem:[#allocation2 + $0x8] sm:$0xff]
    %v31 = vld [vmem:[%s1] sm:$0x1]
    %v33 = vlaneseq
    %v34 = vshrl.u32 %v33, 7
    %v35 = vsub.s32 0, %v34
    %v36 = vrot.slane %v31, %v35
    %v38 = vmul.f32 %v29, %v36
    %v39 = vmul.f32 %v30, %v36
    %v40 = vld [vmem:[%s2] sm:$0x1]
    %v42 = vlaneseq
    %v43 = vshrl.u32 %v42, 7
    %v44 = vsub.s32 0, %v43
    %v45 = vrot.slane %v40, %v44
    %v47 = vadd.f32 %v38, %v45
    %v48 = vadd.f32 %v39, %v45
    %v49 = vand.u32 2147483647, %v47
    %v50 = vand.u32 2147483647, %v48
    %v51 = vsub.f32 1.0, %v49
    %v52 = vsub.f32 1.0, %v50
    %v53 = vrcp.pop %v51
    %v54 = vmul.f32 %v47, %v53
    %v55 = vrcp.pop %v52
    %v56 = vmul.f32 %v48, %v55
    %57 = vst [vmem:[#allocation5] sm:$0xff] %v54
    %58 = vst [vmem:[#allocation5 + $0x8] sm:$0xff] %v56
    // Predicated region
    $region18: #{tpu_custom_call.1} parent=1 // pred_check
      _
    $region19: #{tpu_custom_call.1} parent=1 // pred_check_branch
      %60 = sbr.rel (0) target = $region21
    $region20: #{tpu_custom_call.1} parent=1 // pred_region
      %s62 = ssub.s32 256, 256
      %63 = vsyncadd [#allocation4], %s62
      %s64 = sshll.u32 [#allocation5], 4
      %s65 = int_to_ptr.vmem [resolvable:$true] %s64
      %70 = dma.vmem_to_hbm [thread:$0]  %s65, 256, %s3, [#allocation4], 128, 128, 8
    $region21: #{tpu_custom_call.1} parent=1 // pred_fallthru
      _
    // Predicated region
    $region22: #{tpu_custom_call.1} parent=1 // pred_check
      _
    $region23: #{tpu_custom_call.1} parent=1 // pred_check_branch
      %72 = sbr.rel (0) target = $region25
    $region24: #{tpu_custom_call.1} parent=1 // pred_region
      %73 = dma.done [#allocation4], 256
    $region25: #{tpu_custom_call.1} parent=1 // pred_fallthru
      _
    %74 = vsyncpa [#allocation3], 1
    %75 = vsyncpa [#allocation4], 1

</llo_original>
